<compile_context>
chip_gen: v6e
topology: v6e:2x2x1
jax: 0.10.0
libtpu: 0.0.40
codegen_flags: <defaults>
</compile_context>

<pallas_src>
import functools

import jax
import jax.numpy as jnp
from jax.experimental import pallas as pl
from jax.experimental.pallas import tpu as pltpu

NUM_CLASS = 22  # BatchGNN.NUM_CLASS


def _round_up(x, m):
    return (x + m - 1) // m * m


def _pick_tile_m():
    # Per-step footprint at TILE_M=2048 is < 1 MiB double-buffered (bf16 [2048,64] lhs +
    # bf16 [2048,32] out + a few-KiB resident weight) -- far below even v7x's 32 MiB scoped
    # VMEM -- so no generation-dependent halving; big tiles amortize the ~0.35us/step cost.
    return 2048


def _choose_tiles(m, tile_m, min_steps=2):
    """Sublane-aligned M tile with >= min_steps grid steps when possible (megacore sharding)."""
    m8 = _round_up(max(m, 8), 8)
    tm = min(tile_m, m8)
    if m8 > 8 and m8 // tm < min_steps:
        tm = _round_up(-(-m8 // min_steps), 8)
    m_pad = _round_up(m, tm)
    return tm, m_pad


# -----------------------------------------------------------------------------
# Pallas kernels
# -----------------------------------------------------------------------------
def sage_layer_kernel(lhs_ref, w_ref, b_ref, out_ref, *, apply_relu):
    """One BatchGNN hidden layer on an M-tile.

    lhs_ref: [TM, 2D] bf16  concat([mean_k(neigh_k), self]) built in the jitted glue
    w_ref  : [2D, H]  bf16  nn.Linear weight ([in, out] layout)
    b_ref  : [1, H]   f32   nn.Linear bias
    out_ref: [TM, H]  bf16  L2-normalized layer output
    """
    h = jnp.dot(lhs_ref[...], w_ref[...], preferred_element_type=jnp.float32) + b_ref[...]
    if apply_relu:                       # the last layer uses nn.Identity
        h = jnp.maximum(h, 0.0)
    # nn.Dropout(0.1) is identity in the deterministic (eval) forward.
    ss = jnp.sum(h * h, axis=-1, keepdims=True)
    # torch: h / (||h||_2 + 1e-8).  Single EUP rsqrt; epsilon moved inside the sqrt
    # (negligible difference for L2-normalized activations).
    out_ref[...] = (h * jax.lax.rsqrt(ss + 1e-12)).astype(out_ref.dtype)


def final_layer_ce_kernel(lhs_ref, w_ref, b_ref, lab_ref, loss_ref, *,
                          num_classes, batch_size):
    """Final BatchGNN layer (Identity + L2 norm) fused with nn.CrossEntropyLoss (mean).

    Gridded over batch tiles; loss_ref is a resident (1,1) accumulator across the grid.
    lhs_ref : [TB, 2D] bf16
    w_ref   : [2D, Cp] bf16  class dim zero-padded to Cp = 128 lanes
    b_ref   : [1, Cp]  f32
    lab_ref : [TB, 1]  int32 label per row; -1 marks row padding
    loss_ref: [1, 1]   f32   mean CE over the real batch rows
    """
    @pl.when(pl.program_id(0) == 0)
    def _():
        loss_ref[...] = jnp.zeros_like(loss_ref)

    h = jnp.dot(lhs_ref[...], w_ref[...], preferred_element_type=jnp.float32) + b_ref[...]
    ss = jnp.sum(h * h, axis=-1, keepdims=True)      # padded class columns are exactly 0
    logits = h * jax.lax.rsqrt(ss + 1e-12)           # BatchGNN L2-normalizes every layer

    cls = jax.lax.broadcasted_iota(jnp.int32, logits.shape, 1)
    valid_cls = cls < num_classes                    # mask the lane padding out of the LSE
    lab = lab_ref[...]                               # (TB, 1) int32
    m = jnp.max(jnp.where(valid_cls, logits, -1e30), axis=-1, keepdims=True)
    se = jnp.sum(jnp.where(valid_cls, jnp.exp(logits - m), 0.0), axis=-1, keepdims=True)
    lse = jnp.log(se) + m
    picked = jnp.sum(jnp.where(cls == lab, logits, 0.0), axis=-1, keepdims=True)
    row_w = (lab >= 0).astype(jnp.float32)           # 0 for padded rows
    per_ex = (lse - picked) * row_w
    loss_ref[...] += jnp.sum(per_ex, axis=0, keepdims=True) * (1.0 / batch_size)


# -----------------------------------------------------------------------------
# Wrappers around pallas_call
# -----------------------------------------------------------------------------
def _sage_layer(lhs, w, b, *, apply_relu, tile_m):
    m, d_in = lhs.shape
    h_out = w.shape[1]
    tm, m_pad = _choose_tiles(m, tile_m)
    if m_pad != m:
        lhs = jnp.pad(lhs, ((0, m_pad - m), (0, 0)))
    out = pl.pallas_call(
        functools.partial(sage_layer_kernel, apply_relu=apply_relu),
        out_shape=jax.ShapeDtypeStruct((m_pad, h_out), jnp.bfloat16),
        grid_spec=pltpu.PrefetchScalarGridSpec(
            num_scalar_prefetch=0,
            grid=(m_pad // tm,),
            in_specs=[
                pl.BlockSpec((tm, d_in), lambda i: (i, 0)),      # activations: tiled over M
                pl.BlockSpec((d_in, h_out), lambda i: (0, 0)),   # weight: resident
                pl.BlockSpec((1, h_out), lambda i: (0, 0)),      # bias: resident
            ],
            out_specs=pl.BlockSpec((tm, h_out), lambda i: (i, 0)),
        ),
        compiler_params=pltpu.CompilerParams(dimension_semantics=("parallel",)),
    )(lhs, w, b)
    return out[:m] if m_pad != m else out


def _final_layer_ce(lhs, w, b, labels, *, num_classes, batch_size, tile_b=1024):
    bsz, d_in = lhs.shape
    c_pad = w.shape[1]                    # class dim already lane-padded (22 -> 128)
    tb, b_pad = _choose_tiles(bsz, tile_b, min_steps=1)
    if b_pad != bsz:
        lhs = jnp.pad(lhs, ((0, b_pad - bsz), (0, 0)))
    lab = jnp.full((b_pad, 1), -1, jnp.int32).at[:bsz, 0].set(labels.astype(jnp.int32))
    out = pl.pallas_call(
        functools.partial(final_layer_ce_kernel, num_classes=num_classes,
                          batch_size=batch_size),
        out_shape=jax.ShapeDtypeStruct((1, 1), jnp.float32),
        grid_spec=pltpu.PrefetchScalarGridSpec(
            num_scalar_prefetch=0,
            grid=(b_pad // tb,),
            in_specs=[
                pl.BlockSpec((tb, d_in), lambda i: (i, 0)),
                pl.BlockSpec((d_in, c_pad), lambda i: (0, 0)),
                pl.BlockSpec((1, c_pad), lambda i: (0, 0)),
                pl.BlockSpec((tb, 1), lambda i: (i, 0)),
            ],
            out_specs=pl.BlockSpec((1, 1), lambda i: (0, 0)),    # resident loss accumulator
        ),
        compiler_params=pltpu.CompilerParams(dimension_semantics=("arbitrary",)),
    )(lhs, w, b, lab)
    return out[0, 0]


# -----------------------------------------------------------------------------
# Model prep + deduped BatchGNN message passing (jitted end to end)
# -----------------------------------------------------------------------------
def prepare_params(params):
    """Hoisted once per model: bf16 weight casts, bias reshape, final class-dim lane padding."""
    prepped = []
    last = len(params) - 1
    for i, (w, b) in enumerate(params):
        if i == last:
            c = w.shape[1]
            cp = _round_up(c, 128)        # lane-dense logits (22 -> 128); never stored to HBM
            w = jnp.pad(w, ((0, 0), (0, cp - c)))
            b = jnp.pad(b, (0, cp - c))
        prepped.append((w.astype(jnp.bfloat16),
                        b.astype(jnp.float32).reshape(1, -1)))
    return prepped


@functools.partial(jax.jit, static_argnames=("num_classes", "tile_m"))
def sage_classifier_forward(prepped_params, feat, neighbor_table, batch, labels, *,
                            num_classes, tile_m=None):
    """SageClassifier.forward: preds = BatchGNN(g, batch); loss = CrossEntropy(preds, labels)."""
    n, k = neighbor_table.shape
    num_layers = len(prepped_params)
    if tile_m is None:
        tile_m = _pick_tile_m()

    nbr = neighbor_table.astype(jnp.int32)
    batch = batch.astype(jnp.int32)

    # ---- dedupe the recursive fan-out bottom-up (torch.unique trick), fixed sizes so the
    #      whole forward jits; fill rows are harmless duplicates of node 0 ----
    node_sets = [None] * (num_layers + 1)
    node_sets[num_layers] = batch
    for l in range(num_layers, 0, -1):
        cur = node_sets[l]
        ext = jnp.concatenate([cur, nbr[cur].reshape(-1)])
        cap = min(n, cur.shape[0] * (k + 1))
        node_sets[l - 1] = jnp.unique(ext, size=cap, fill_value=0)

    # Layer-0 features for the deepest frontier.
    # TODO(synk): FeatureSampler/FeatureAutoencoder + event-label one-hot extraction from the
    # graph object are not part of the provided module; layer-0 features come in as `feat`.
    h = feat[node_sets[0]].astype(jnp.float32)
    source = node_sets[0]

    loss = None
    for l in range(1, num_layers + 1):
        w, b = prepped_params[l - 1]
        targets = node_sets[l]
        # Map global node ids -> rows of h (previous frontier).  Duplicate fill ids all hold
        # the same node's value, so scatter tie-breaking is irrelevant.
        pos = jnp.zeros((n,), jnp.int32).at[source].set(
            jnp.arange(source.shape[0], dtype=jnp.int32))
        agg = jnp.mean(h[pos[nbr[targets]]].astype(jnp.float32), axis=1)     # [M, D]
        self_h = h[pos[targets]].astype(jnp.float32)                         # [M, D]
        lhs = jnp.concatenate([agg, self_h], axis=-1).astype(jnp.bfloat16)   # [M, 2D] bf16
        if l < num_layers:
            h = _sage_layer(lhs, w, b, apply_relu=True, tile_m=tile_m)       # ReLU + L2 norm
            source = targets
        else:
            # Final layer (Identity + L2 norm) fused with CrossEntropyLoss; logits stay VMEM.
            loss = _final_layer_ce(lhs, w, b, labels, num_classes=num_classes,
                                   batch_size=targets.shape[0])
    # TODO(synk): autoencoder reconstruction loss (feature_sampler.get_loss()) cannot be
    # reproduced -- the FeatureAutoencoder implementation is not part of the given module.
    return loss


# -----------------------------------------------------------------------------
# Pure-JAX reference (mirrors the torch math: mean aggr, concat, Linear, ReLU, L2 norm, CE)
# -----------------------------------------------------------------------------
def _reference_forward(params, feat, neighbor_table, batch, labels):
    n = neighbor_table.shape[0]
    h = feat.astype(jnp.float32)
    num_layers = len(params)
    logits = None
    for l, (w, b) in enumerate(params):
        ids = jnp.arange(n) if l < num_layers - 1 else batch
        agg = jnp.mean(h[neighbor_table[ids]], axis=1)
        z = jnp.concatenate([agg, h[ids]], axis=-1) @ w + b
        if l < num_layers - 1:
            z = jnp.maximum(z, 0.0)
        z = z / (jnp.linalg.norm(z, axis=-1, keepdims=True) + 1e-8)
        if l < num_layers - 1:
            h = z
        else:
            logits = z
    lse = jax.scipy.special.logsumexp(logits, axis=-1)
    picked = jnp.take_along_axis(logits, labels[:, None], axis=1)[:, 0]
    return jnp.mean(lse - picked)


# -----------------------------------------------------------------------------
# Deterministic synthetic setup
# -----------------------------------------------------------------------------
def init_params(key, in_dim, hidden, out_dim, layers):
    dims = [(2 * (in_dim + NUM_CLASS), hidden)]
    dims += [(2 * hidden, hidden) for _ in range(layers - 2)]
    dims += [(2 * hidden, out_dim)]
    params = []
    for (di, do) in dims:
        key, kw, kb = jax.random.split(key, 3)
        bound = 1.0 / jnp.sqrt(di)
        w = jax.random.uniform(kw, (di, do), jnp.float32, -bound, bound)
        b = jax.random.uniform(kb, (do,), jnp.float32, -bound, bound)
        params.append((w, b))
    return params


if __name__ == "__main__":
    # Small shapes consistent with the module: encoding_dim=10 (-> 32 features with the
    # 22-class one-hot), hidden=32, out_dim=22, layers=3, sample_size=4, batch=8.
    in_dim, hidden, out_dim, layers = 10, 32, NUM_CLASS, 3
    n_nodes, sample_size, batch_size = 64, 4, 8

    key = jax.random.PRNGKey(0)
    k_feat, k_lab, k_nb, k_batch, k_y, k_par = jax.random.split(key, 6)

    node_feats = jax.random.normal(k_feat, (n_nodes, in_dim), jnp.float32)
    node_label = jax.random.randint(k_lab, (n_nodes,), 0, NUM_CLASS)
    node_onehot = jax.nn.one_hot(node_label, NUM_CLASS, dtype=jnp.float32)
    feat = jnp.concatenate([node_feats, node_onehot], axis=-1)                     # [64, 32]

    neighbor_table = jax.random.randint(k_nb, (n_nodes, sample_size), 0, n_nodes)  # [64, 4]
    batch = jax.random.randint(k_batch, (batch_size,), 0, n_nodes)                 # [8]
    labels = jax.random.randint(k_y, (batch_size,), 0, out_dim)                    # [8]

    params = init_params(k_par, in_dim, hidden, out_dim, layers)
    prepped = prepare_params(params)   # bf16 cast + class-dim lane padding, once per model

    loss = sage_classifier_forward(prepped, feat, neighbor_table, batch, labels,
                                   num_classes=out_dim)
    loss = jax.block_until_ready(loss)
    assert jnp.isfinite(loss)

    ref = _reference_forward(params, feat, neighbor_table, batch, labels)
    assert jnp.allclose(loss, ref, rtol=5e-2, atol=5e-2), (float(loss), float(ref))
    print("KERNEL_OK")
</pallas_src>

<mosaic_0001>
module attributes {stable_mosaic.version = 11 : i64} {
  func.func private @main(%arg0: i32) attributes {dimension_semantics = [#tpu.dimension_semantics<core_parallel>], iteration_bounds = array<i64: 2>, tpu.core_type = #tpu.core_type<sc_scalar_subcore>, window_params = []} {
    return
  }
}

module attributes {stable_mosaic.version = 11 : i64} {
  func.func private @main(%arg0: i32) attributes {dimension_semantics = [#tpu.dimension_semantics<core_parallel>], iteration_bounds = array<i64: 2>, tpu.core_type = #tpu.core_type<sc_scalar_subcore>, window_params = []} {
    return
  }
}

module attributes {stable_mosaic.version = 11 : i64} {
  func.func @sage_layer_kernel(%arg0: i32, %arg1: memref<32x64xbf16, #tpu.memory_space<vmem>>, %arg2: memref<64x32xbf16, #tpu.memory_space<vmem>>, %arg3: memref<1x32xf32, #tpu.memory_space<vmem>>, %arg4: memref<32x32xbf16, #tpu.memory_space<vmem>>) attributes {dimension_semantics = [#tpu.dimension_semantics<parallel>], iteration_bounds = array<i64: 2>, scalar_prefetch = 0 : i64, scratch_operands = 0 : i64, tpu.core_type = #tpu.core_type<tc>, window_params = [{transform_indices = @transform_0, window_bounds = array<i64: 32, 64>}, {pipeline_mode = #tpu.pipeline_mode<synchronous>, transform_indices = @transform_1, window_bounds = array<i64: 64, 32>}, {pipeline_mode = #tpu.pipeline_mode<synchronous>, transform_indices = @transform_2, window_bounds = array<i64: 1, 32>}, {transform_indices = @transform_3, window_bounds = array<i64: 32, 32>}]} {
    %c0 = arith.constant 0 : index
    %c0_0 = arith.constant 0 : index
    %0 = vector.load %arg1[%c0, %c0_0] : memref<32x64xbf16, #tpu.memory_space<vmem>>, vector<32x64xbf16>
    %c0_1 = arith.constant 0 : index
    %c0_2 = arith.constant 0 : index
    %1 = vector.load %arg2[%c0_1, %c0_2] : memref<64x32xbf16, #tpu.memory_space<vmem>>, vector<64x32xbf16>
    %cst = arith.constant dense<0.000000e+00> : vector<32x32xf32>
    %2 = tpu.matmul %0, %1, %cst {dimension_numbers = #tpu.dot_dimension_numbers<[1], [0], [0], [1], [0, 0, 1, 1], [], []>} : vector<32x64xbf16>, vector<64x32xbf16>, vector<32x32xf32> -> vector<32x32xf32>
    %c0_3 = arith.constant 0 : index
    %c0_4 = arith.constant 0 : index
    %3 = vector.load %arg3[%c0_3, %c0_4] : memref<1x32xf32, #tpu.memory_space<vmem>>, vector<1x32xf32>
    %4 = vector.broadcast %3 : vector<1x32xf32> to vector<32x32xf32>
    %5 = arith.addf %2, %4 : vector<32x32xf32>
    %cst_5 = arith.constant 0.000000e+00 : f32
    %6 = vector.broadcast %cst_5 : f32 to vector<32x32xf32>
    %7 = arith.maximumf %5, %6 : vector<32x32xf32>
    %8 = arith.mulf %7, %7 : vector<32x32xf32>
    %cst_6 = arith.constant dense<0.000000e+00> : vector<32xf32>
    %9 = vector.multi_reduction <add>, %8, %cst_6 [1] : vector<32x32xf32> to vector<32xf32>
    %10 = vector.shape_cast %9 : vector<32xf32> to vector<32x1xf32>
    %cst_7 = arith.constant 9.99999996E-13 : f32
    %11 = vector.broadcast %cst_7 : f32 to vector<32x1xf32>
    %12 = arith.addf %10, %11 : vector<32x1xf32>
    %13 = math.rsqrt %12 : vector<32x1xf32>
    %14 = vector.broadcast %13 : vector<32x1xf32> to vector<32x32xf32>
    %15 = arith.mulf %7, %14 : vector<32x32xf32>
    %16 = arith.truncf %15 : vector<32x32xf32> to vector<32x32xbf16>
    %c0_8 = arith.constant 0 : index
    %c0_9 = arith.constant 0 : index
    %17 = vector.load %arg4[%c0_8, %c0_9] : memref<32x32xbf16, #tpu.memory_space<vmem>>, vector<32x32xbf16>
    tpu.vector_store %arg4[%c0_8, %c0_9], %16 {strides = array<i32>} : memref<32x32xbf16, #tpu.memory_space<vmem>>, vector<32x32xbf16>,
    return
  }
  func.func @transform_0(%arg0: i32) -> (i32, i32) {
    %c0_i32 = arith.constant 0 : i32
    %c0_i32_0 = arith.constant 0 : i32
    return %arg0, %c0_i32 : i32, i32
  }
  func.func @transform_1(%arg0: i32) -> (i32, i32) {
    %c0_i32 = arith.constant 0 : i32
    %c0_i32_0 = arith.constant 0 : i32
    %c0_i32_1 = arith.constant 0 : i32
    return %c0_i32, %c0_i32_0 : i32, i32
  }
  func.func @transform_2(%arg0: i32) -> (i32, i32) {
    %c0_i32 = arith.constant 0 : i32
    %c0_i32_0 = arith.constant 0 : i32
    %c0_i32_1 = arith.constant 0 : i32
    return %c0_i32, %c0_i32_0 : i32, i32
  }
  func.func @transform_3(%arg0: i32) -> (i32, i32) {
    %c0_i32 = arith.constant 0 : i32
    %c0_i32_0 = arith.constant 0 : i32
    return %arg0, %c0_i32 : i32, i32
  }
}

module attributes {stable_mosaic.version = 11 : i64} {
  func.func @sage_layer_kernel(%arg0: i32, %arg1: memref<24x64xbf16, #tpu.memory_space<vmem>>, %arg2: memref<64x32xbf16, #tpu.memory_space<vmem>>, %arg3: memref<1x32xf32, #tpu.memory_space<vmem>>, %arg4: memref<24x32xbf16, #tpu.memory_space<vmem>>) attributes {dimension_semantics = [#tpu.dimension_semantics<parallel>], iteration_bounds = array<i64: 2>, scalar_prefetch = 0 : i64, scratch_operands = 0 : i64, tpu.core_type = #tpu.core_type<tc>, window_params = [{transform_indices = @transform_0, window_bounds = array<i64: 24, 64>}, {pipeline_mode = #tpu.pipeline_mode<synchronous>, transform_indices = @transform_1, window_bounds = array<i64: 64, 32>}, {pipeline_mode = #tpu.pipeline_mode<synchronous>, transform_indices = @transform_2, window_bounds = array<i64: 1, 32>}, {transform_indices = @transform_3, window_bounds = array<i64: 24, 32>}]} {
    %c0 = arith.constant 0 : index
    %c0_0 = arith.constant 0 : index
    %0 = vector.load %arg1[%c0, %c0_0] : memref<24x64xbf16, #tpu.memory_space<vmem>>, vector<24x64xbf16>
    %c0_1 = arith.constant 0 : index
    %c0_2 = arith.constant 0 : index
    %1 = vector.load %arg2[%c0_1, %c0_2] : memref<64x32xbf16, #tpu.memory_space<vmem>>, vector<64x32xbf16>
    %cst = arith.constant dense<0.000000e+00> : vector<24x32xf32>
    %2 = tpu.matmul %0, %1, %cst {dimension_numbers = #tpu.dot_dimension_numbers<[1], [0], [0], [1], [0, 0, 1, 1], [], []>} : vector<24x64xbf16>, vector<64x32xbf16>, vector<24x32xf32> -> vector<24x32xf32>
    %c0_3 = arith.constant 0 : index
    %c0_4 = arith.constant 0 : index
    %3 = vector.load %arg3[%c0_3, %c0_4] : memref<1x32xf32, #tpu.memory_space<vmem>>, vector<1x32xf32>
    %4 = vector.broadcast %3 : vector<1x32xf32> to vector<24x32xf32>
    %5 = arith.addf %2, %4 : vector<24x32xf32>
    %cst_5 = arith.constant 0.000000e+00 : f32
    %6 = vector.broadcast %cst_5 : f32 to vector<24x32xf32>
    %7 = arith.maximumf %5, %6 : vector<24x32xf32>
    %8 = arith.mulf %7, %7 : vector<24x32xf32>
    %cst_6 = arith.constant dense<0.000000e+00> : vector<24xf32>
    %9 = vector.multi_reduction <add>, %8, %cst_6 [1] : vector<24x32xf32> to vector<24xf32>
    %10 = vector.shape_cast %9 : vector<24xf32> to vector<24x1xf32>
    %cst_7 = arith.constant 9.99999996E-13 : f32
    %11 = vector.broadcast %cst_7 : f32 to vector<24x1xf32>
    %12 = arith.addf %10, %11 : vector<24x1xf32>
    %13 = math.rsqrt %12 : vector<24x1xf32>
    %14 = vector.broadcast %13 : vector<24x1xf32> to vector<24x32xf32>
    %15 = arith.mulf %7, %14 : vector<24x32xf32>
    %16 = arith.truncf %15 : vector<24x32xf32> to vector<24x32xbf16>
    %c0_8 = arith.constant 0 : index
    %c0_9 = arith.constant 0 : index
    %17 = vector.load %arg4[%c0_8, %c0_9] : memref<24x32xbf16, #tpu.memory_space<vmem>>, vector<24x32xbf16>
    tpu.vector_store %arg4[%c0_8, %c0_9], %16 {strides = array<i32>} : memref<24x32xbf16, #tpu.memory_space<vmem>>, vector<24x32xbf16>,
    return
  }
  func.func @transform_0(%arg0: i32) -> (i32, i32) {
    %c0_i32 = arith.constant 0 : i32
    %c0_i32_0 = arith.constant 0 : i32
    return %arg0, %c0_i32 : i32, i32
  }
  func.func @transform_1(%arg0: i32) -> (i32, i32) {
    %c0_i32 = arith.constant 0 : i32
    %c0_i32_0 = arith.constant 0 : i32
    %c0_i32_1 = arith.constant 0 : i32
    return %c0_i32, %c0_i32_0 : i32, i32
  }
  func.func @transform_2(%arg0: i32) -> (i32, i32) {
    %c0_i32 = arith.constant 0 : i32
    %c0_i32_0 = arith.constant 0 : i32
    %c0_i32_1 = arith.constant 0 : i32
    return %c0_i32, %c0_i32_0 : i32, i32
  }
  func.func @transform_3(%arg0: i32) -> (i32, i32) {
    %c0_i32 = arith.constant 0 : i32
    %c0_i32_0 = arith.constant 0 : i32
    return %arg0, %c0_i32 : i32, i32
  }
}

module attributes {stable_mosaic.version = 11 : i64} {
  func.func @final_layer_ce_kernel(%arg0: i32, %arg1: memref<8x64xbf16, #tpu.memory_space<vmem>>, %arg2: memref<64x128xbf16, #tpu.memory_space<vmem>>, %arg3: memref<1x128xf32, #tpu.memory_space<vmem>>, %arg4: memref<8x1xi32, #tpu.memory_space<vmem>>, %arg5: memref<1x1xf32, #tpu.memory_space<vmem>>) attributes {dimension_semantics = [#tpu.dimension_semantics<arbitrary>], iteration_bounds = array<i64: 1>, scalar_prefetch = 0 : i64, scratch_operands = 0 : i64, tpu.core_type = #tpu.core_type<tc>, window_params = [{transform_indices = @transform_0, window_bounds = array<i64: 8, 64>}, {pipeline_mode = #tpu.pipeline_mode<synchronous>, transform_indices = @transform_1, window_bounds = array<i64: 64, 128>}, {pipeline_mode = #tpu.pipeline_mode<synchronous>, transform_indices = @transform_2, window_bounds = array<i64: 1, 128>}, {transform_indices = @transform_3, window_bounds = array<i64: 8, 1>}, {pipeline_mode = #tpu.pipeline_mode<synchronous>, transform_indices = @transform_4, window_bounds = array<i64: 1, 1>}]} {
    %c0_i32 = arith.constant 0 : i32
    %0 = arith.cmpi eq, %arg0, %c0_i32 : i32
    %1 = arith.extui %0 : i1 to i32
    %c0_i32_0 = arith.constant 0 : i32
    %2 = arith.cmpi ne, %1, %c0_i32_0 : i32
    scf.if %2 {
      %cst_23 = arith.constant 0.000000e+00 : f32
      %53 = vector.broadcast %cst_23 : f32 to vector<1x1xf32>
      %c0_24 = arith.constant 0 : index
      %c0_25 = arith.constant 0 : index
      %54 = vector.load %arg5[%c0_24, %c0_25] : memref<1x1xf32, #tpu.memory_space<vmem>>, vector<1x1xf32>
      tpu.vector_store %arg5[%c0_24, %c0_25], %53 {strides = array<i32>} : memref<1x1xf32, #tpu.memory_space<vmem>>, vector<1x1xf32>,
    } else {
    }
    %c0 = arith.constant 0 : index
    %c0_1 = arith.constant 0 : index
    %3 = vector.load %arg1[%c0, %c0_1] : memref<8x64xbf16, #tpu.memory_space<vmem>>, vector<8x64xbf16>
    %c0_2 = arith.constant 0 : index
    %c0_3 = arith.constant 0 : index
    %4 = vector.load %arg2[%c0_2, %c0_3] : memref<64x128xbf16, #tpu.memory_space<vmem>>, vector<64x128xbf16>
    %cst = arith.constant dense<0.000000e+00> : vector<8x128xf32>
    %5 = tpu.matmul %3, %4, %cst {dimension_numbers = #tpu.dot_dimension_numbers<[1], [0], [0], [1], [0, 0, 1, 1], [], []>} : vector<8x64xbf16>, vector<64x128xbf16>, vector<8x128xf32> -> vector<8x128xf32>
    %c0_4 = arith.constant 0 : index
    %c0_5 = arith.constant 0 : index
    %6 = vector.load %arg3[%c0_4, %c0_5] : memref<1x128xf32, #tpu.memory_space<vmem>>, vector<1x128xf32>
    %7 = vector.broadcast %6 : vector<1x128xf32> to vector<8x128xf32>
    %8 = arith.addf %5, %7 : vector<8x128xf32>
    %9 = arith.mulf %8, %8 : vector<8x128xf32>
    %cst_6 = arith.constant dense<0.000000e+00> : vector<8xf32>
    %10 = vector.multi_reduction <add>, %9, %cst_6 [1] : vector<8x128xf32> to vector<8xf32>
    %11 = vector.shape_cast %10 : vector<8xf32> to vector<8x1xf32>
    %cst_7 = arith.constant 9.99999996E-13 : f32
    %12 = vector.broadcast %cst_7 : f32 to vector<8x1xf32>
    %13 = arith.addf %11, %12 : vector<8x1xf32>
    %14 = math.rsqrt %13 : vector<8x1xf32>
    %15 = vector.broadcast %14 : vector<8x1xf32> to vector<8x128xf32>
    %16 = arith.mulf %8, %15 : vector<8x128xf32>
    %17 = tpu.iota {dimensions = array<i32: 1>} : vector<8x128xi32>
    %c22_i32 = arith.constant 22 : i32
    %18 = vector.broadcast %c22_i32 : i32 to vector<8x128xi32>
    %19 = arith.cmpi slt, %17, %18 : vector<8x128xi32>
    %c0_8 = arith.constant 0 : index
    %c0_9 = arith.constant 0 : index
    %20 = vector.load %arg4[%c0_8, %c0_9] : memref<8x1xi32, #tpu.memory_space<vmem>>, vector<8x1xi32>
    %cst_10 = arith.constant -1.000000e+30 : f32
    %21 = vector.broadcast %cst_10 : f32 to vector<8x128xf32>
    %22 = arith.select %19, %16, %21 : vector<8x128xi1>, vector<8x128xf32>
    %cst_11 = arith.constant dense<0xFF800000> : vector<8xf32>
    %23 = vector.multi_reduction <maximumf>, %22, %cst_11 [1] : vector<8x128xf32> to vector<8xf32>
    %24 = vector.shape_cast %23 : vector<8xf32> to vector<8x1xf32>
    %25 = vector.broadcast %24 : vector<8x1xf32> to vector<8x128xf32>
    %26 = arith.subf %16, %25 : vector<8x128xf32>
    %27 = math.exp %26 : vector<8x128xf32>
    %cst_12 = arith.constant 0.000000e+00 : f32
    %28 = vector.broadcast %cst_12 : f32 to vector<8x128xf32>
    %29 = arith.select %19, %27, %28 : vector<8x128xi1>, vector<8x128xf32>
    %cst_13 = arith.constant dense<0.000000e+00> : vector<8xf32>
    %30 = vector.multi_reduction <add>, %29, %cst_13 [1] : vector<8x128xf32> to vector<8xf32>
    %31 = vector.shape_cast %30 : vector<8xf32> to vector<8x1xf32>
    %32 = math.log %31 : vector<8x1xf32>
    %33 = arith.addf %32, %24 : vector<8x1xf32>
    %34 = vector.broadcast %20 : vector<8x1xi32> to vector<8x128xi32>
    %35 = arith.cmpi eq, %17, %34 : vector<8x128xi32>
    %cst_14 = arith.constant 0.000000e+00 : f32
    %36 = vector.broadcast %cst_14 : f32 to vector<8x128xf32>
    %37 = arith.select %35, %16, %36 : vector<8x128xi1>, vector<8x128xf32>
    %cst_15 = arith.constant dense<0.000000e+00> : vector<8xf32>
    %38 = vector.multi_reduction <add>, %37, %cst_15 [1] : vector<8x128xf32> to vector<8xf32>
    %39 = vector.shape_cast %38 : vector<8xf32> to vector<8x1xf32>
    %c0_i32_16 = arith.constant 0 : i32
    %40 = vector.broadcast %c0_i32_16 : i32 to vector<8x1xi32>
    %41 = arith.cmpi sge, %20, %40 : vector<8x1xi32>
    %42 = arith.extui %41 : vector<8x1xi1> to vector<8x1xi32>
    %43 = arith.sitofp %42 : vector<8x1xi32> to vector<8x1xf32>
    %44 = arith.subf %33, %39 : vector<8x1xf32>
    %45 = arith.mulf %44, %43 : vector<8x1xf32>
    %c0_17 = arith.constant 0 : index
    %c0_18 = arith.constant 0 : index
    %46 = vector.load %arg5[%c0_17, %c0_18] : memref<1x1xf32, #tpu.memory_space<vmem>>, vector<1x1xf32>
    %cst_19 = arith.constant dense<0.000000e+00> : vector<1xf32>
    %47 = vector.multi_reduction <add>, %45, %cst_19 [0] : vector<8x1xf32> to vector<1xf32>
    %48 = vector.shape_cast %47 : vector<1xf32> to vector<1x1xf32>
    %cst_20 = arith.constant 1.250000e-01 : f32
    %49 = vector.broadcast %cst_20 : f32 to vector<1x1xf32>
    %50 = arith.mulf %48, %49 : vector<1x1xf32>
    %51 = arith.addf %46, %50 : vector<1x1xf32>
    %c0_21 = arith.constant 0 : index
    %c0_22 = arith.constant 0 : index
    %52 = vector.load %arg5[%c0_21, %c0_22] : memref<1x1xf32, #tpu.memory_space<vmem>>, vector<1x1xf32>
    tpu.vector_store %arg5[%c0_21, %c0_22], %51 {strides = array<i32>} : memref<1x1xf32, #tpu.memory_space<vmem>>, vector<1x1xf32>,
    return
  }
  func.func @transform_0(%arg0: i32) -> (i32, i32) {
    %c0_i32 = arith.constant 0 : i32
    %c0_i32_0 = arith.constant 0 : i32
    return %arg0, %c0_i32 : i32, i32
  }
  func.func @transform_1(%arg0: i32) -> (i32, i32) {
    %c0_i32 = arith.constant 0 : i32
    %c0_i32_0 = arith.constant 0 : i32
    %c0_i32_1 = arith.constant 0 : i32
    return %c0_i32, %c0_i32_0 : i32, i32
  }
  func.func @transform_2(%arg0: i32) -> (i32, i32) {
    %c0_i32 = arith.constant 0 : i32
    %c0_i32_0 = arith.constant 0 : i32
    %c0_i32_1 = arith.constant 0 : i32
    return %c0_i32, %c0_i32_0 : i32, i32
  }
  func.func @transform_3(%arg0: i32) -> (i32, i32) {
    %c0_i32 = arith.constant 0 : i32
    %c0_i32_0 = arith.constant 0 : i32
    return %arg0, %c0_i32 : i32, i32
  }
  func.func @transform_4(%arg0: i32) -> (i32, i32) {
    %c0_i32 = arith.constant 0 : i32
    %c0_i32_0 = arith.constant 0 : i32
    %c0_i32_1 = arith.constant 0 : i32
    return %c0_i32, %c0_i32_0 : i32, i32
  }
}

</mosaic_0001>

<llo_original>
// kernel: lt.0
$region0: #{lt.0}
  #allocation2 [shape = 's32[1]{0}', space=sflag, size = 0x4, scoped, tag = 'scoped memory for lt.0']
  %s0 = inlined_call_operand.<no memory space> [shape: s32[], index: 0, kind: input, shape index: {}]
  %s1 = inlined_call_operand.hbm [shape: s32[40], index: 1, kind: output, shape index: {}]
  %v2 = vstv %s0
  $region1: #{lt.0} parent=0
    #allocation0 [shape = 'u8[512]{0}', space=vmem, size = 0x400, scoped, tag = 'operand span for operand 1']
    #allocation1 [shape = 's32[1]{0}', space=sflag, size = 0x4, scoped, tag = 'scoped memory for lt.0']
    %3 = vsyncpa [#allocation1], 0
    %4 = vst [vmem:[#allocation0] sm:$0x1] %v2
    %s6 = ssub.s32 16, 16
    %7 = vsyncadd [#allocation1], %s6
    %s9 = sshll.u32 [#allocation0], 4
    %s10 = int_to_ptr.vmem [resolvable:$true] %s9
    %12 = dma.vmem_to_hbm [thread:$0]  %s10, 16, %s1, [#allocation1]
    %13 = dma.done [#allocation1], 16
    %14 = vsyncpa [#allocation1], 1

// kernel: sage_classifier_forward.3
$region0: #{sage_classifier_forward.3}
  #allocation0 [shape = 'u32[]', space=smem, size = 0x4, offset = 0x4, fixed_abs, tag = 'smem constant byte address 0x4 - core index']
  #allocation1 [shape = 'u32[144,128]{1,0:T(1,128)}', space=vmem, size = 0x12000, scoped, tag = 'internal scratch']
  %s0 = inlined_call_operand.vmem [shape: bf16[64,64], index: 0, kind: input, shape index: {}]
  %s1 = inlined_call_operand.vmem [shape: bf16[64,32], index: 1, kind: input, shape index: {}]
  %s2 = inlined_call_operand.vmem [shape: f32[1,32], index: 2, kind: input, shape index: {}]
  %s3 = inlined_call_operand.vmem [shape: bf16[64,32], index: 3, kind: output, shape index: {}]
  %s4 = sld [smem:[#allocation0]]
  $region45: #{sage_classifier_forward.3} parent=0
    _
  %s6 = ssub.s32 1, %s4
  %s7 = scalar_select 0, %s6, %s4
  loop: start=0, step=1, limit=4
  $region2: #{sage_classifier_forward.3} parent=0 // loop_pre_header
    _
  $region3: #{sage_classifier_forward.3} parent=0 // loop_header
    %s9 = sphi 0, %s13
    %p10 = scmp.ge.s32.totalorder %s9, 4
    %s19 = sphi 0, %s21
    %s22 = sphi 0, %s19
    %s23 = sphi 0, %s22
    %s39 = sphi 0, %s23
    %s43 = sphi 0, %s43
    %s45 = sphi 0, %s43
    %s46 = sphi 0, %s45
    %s60 = sphi 0, %s46
    %s64 = sphi 0, %s64
    %s66 = sphi 0, %s64
    %s67 = sphi 0, %s66
    %s81 = sphi 0, %s67
    %s87 = sphi 0, %s89
    %s90 = sphi 0, %s87
    %s91 = sphi 0, %s90
    %s107 = sphi 0, %s91
  $region4: #{sage_classifier_forward.3} parent=0 // loop_header_branch
    %12 = sbr.rel (%p10) target = $region8
  $region5: #{sage_classifier_forward.3} parent=0 // loop_body
    %s14 = ssub.s32 %s9, 1
    %s15 = ssub.s32 %s9, 2
    %s16 = sadd.s32 %s9, 1
    %s17 = ssub.s32 %s9, %s16
    %p18 = scmp.eq.s32.totalorder %s17, 0
    %s20 = sadd.s32 %s19, 1
    %s21 = scalar_select %p18, %s19, %s20
    %p24 = pneg %p18
    %p25 = scmp.eq.s32.totalorder %s9, 1
    %p26 = por %p24, %p25
    %p27 = scmp.ne.s32.totalorder %s19, %s22
    %p28 = scmp.eq.s32.totalorder %s9, 0
    %p29 = por %p27, %p28
    %p30 = scmp.ne.s32.totalorder %s19, %s22
    %p31 = scmp.eq.s32.totalorder %s14, 1
    %p32 = por %p30, %p31
    %p33 = scmp.ne.s32.totalorder %s22, %s23
    %p34 = scmp.eq.s32.totalorder %s14, 0
    %p35 = por %p33, %p34
    %p36 = scmp.ne.s32.totalorder %s22, %s23
    %p37 = scmp.eq.s32.totalorder %s15, 1
    %p38 = por %p36, %p37
    %p40 = scmp.ne.s32.totalorder %s23, %s39
    %p41 = scmp.eq.s32.totalorder %s15, 0
    %p42 = por %p40, %p41
    %s44 = sadd.s32 %s43, 1
    %p47 = scmp.eq.s32.totalorder %s9, 1
    %p48 = scmp.ne.s32.totalorder %s43, %s45
    %p49 = scmp.eq.s32.totalorder %s9, 0
    %p50 = por %p48, %p49
    %p51 = scmp.ne.s32.totalorder %s43, %s45
    %p52 = scmp.eq.s32.totalorder %s14, 1
    %p53 = por %p51, %p52
    %p54 = scmp.ne.s32.totalorder %s45, %s46
    %p55 = scmp.eq.s32.totalorder %s14, 0
    %p56 = por %p54, %p55
    %p57 = scmp.ne.s32.totalorder %s45, %s46
    %p58 = scmp.eq.s32.totalorder %s15, 1
    %p59 = por %p57, %p58
    %p61 = scmp.ne.s32.totalorder %s46, %s60
    %p62 = scmp.eq.s32.totalorder %s15, 0
    %p63 = por %p61, %p62
    %s65 = sadd.s32 %s64, 1
    %p68 = scmp.eq.s32.totalorder %s9, 1
    %p69 = scmp.ne.s32.totalorder %s64, %s66
    %p70 = scmp.eq.s32.totalorder %s9, 0
    %p71 = por %p69, %p70
    %p72 = scmp.ne.s32.totalorder %s64, %s66
    %p73 = scmp.eq.s32.totalorder %s14, 1
    %p74 = por %p72, %p73
    %p75 = scmp.ne.s32.totalorder %s66, %s67
    %p76 = scmp.eq.s32.totalorder %s14, 0
    %p77 = por %p75, %p76
    %p78 = scmp.ne.s32.totalorder %s66, %s67
    %p79 = scmp.eq.s32.totalorder %s15, 1
    %p80 = por %p78, %p79
    %p82 = scmp.ne.s32.totalorder %s67, %s81
    %p83 = scmp.eq.s32.totalorder %s15, 0
    %p84 = por %p82, %p83
    %s85 = ssub.s32 %s9, %s16
    %p86 = scmp.eq.s32.totalorder %s85, 0
    %s88 = sadd.s32 %s87, 1
    %s89 = scalar_select %p86, %s87, %s88
    %p92 = pneg %p86
    %p93 = scmp.eq.s32.totalorder %s9, 1
    %p94 = por %p92, %p93
    %p95 = scmp.ne.s32.totalorder %s87, %s90
    %p96 = scmp.eq.s32.totalorder %s9, 0
    %p97 = por %p95, %p96
    %p98 = scmp.ne.s32.totalorder %s87, %s90
    %p99 = scmp.eq.s32.totalorder %s14, 1
    %p100 = por %p98, %p99
    %p101 = scmp.ne.s32.totalorder %s90, %s91
    %p102 = scmp.eq.s32.totalorder %s14, 0
    %p103 = por %p101, %p102
    %p104 = scmp.ne.s32.totalorder %s90, %s91
    %p105 = scmp.eq.s32.totalorder %s15, 1
    %p106 = por %p104, %p105
    %p108 = scmp.ne.s32.totalorder %s91, %s107
    %p109 = scmp.eq.s32.totalorder %s15, 0
    %p110 = por %p108, %p109
    %p111 = scmp.le.s32.totalorder 1, %s9
    %p112 = scmp.lt.s32.totalorder %s9, 3
    %p113 = pnand %p111, %p112
    %p114 = pneg %p113
    // Predicated region
    $region9: #{sage_classifier_forward.3} parent=5 // pred_check
      _
    $region10: #{sage_classifier_forward.3} parent=5 // pred_check_branch
      %116 = sbr.rel (%p113) target = $region12
    $region11: #{sage_classifier_forward.3} parent=5 // pred_region
      %s117 = ssub.s32 %s9, 1
      // Predicated region
      $region13: #{sage_classifier_forward.3} parent=11 // pred_check
        %p118 = pneg %p56
      $region14: #{sage_classifier_forward.3} parent=11 // pred_check_branch
        %120 = sbr.rel (%p118) target = $region16
      $region15: #{sage_classifier_forward.3} parent=11 // pred_region
        _
      $region16: #{sage_classifier_forward.3} parent=11 // pred_fallthru
        _
      // Predicated region
      $region17: #{sage_classifier_forward.3} parent=11 // pred_check
        %p121 = pneg %p77
      $region18: #{sage_classifier_forward.3} parent=11 // pred_check_branch
        %123 = sbr.rel (%p121) target = $region20
      $region19: #{sage_classifier_forward.3} parent=11 // pred_region
        _
      $region20: #{sage_classifier_forward.3} parent=11 // pred_fallthru
        _
    $region12: #{sage_classifier_forward.3} parent=5 // pred_fallthru
      _
    %p124 = scmp.lt.s32.totalorder %s9, 2
    // Predicated region
    $region21: #{sage_classifier_forward.3} parent=5 // pred_check
      %p125 = pneg %p124
    $region22: #{sage_classifier_forward.3} parent=5 // pred_check_branch
      %127 = sbr.rel (%p125) target = $region24
    $region23: #{sage_classifier_forward.3} parent=5 // pred_region
      // Predicated region
      $region25: #{sage_classifier_forward.3} parent=23 // pred_check
        %p128 = pneg %p29
      $region26: #{sage_classifier_forward.3} parent=23 // pred_check_branch
        %130 = sbr.rel (%p128) target = $region28
      $region27: #{sage_classifier_forward.3} parent=23 // pred_region
        %s131 = smul.u32 4, %s9
        %p132 = scmp.lt.s32.totalorder %s131, 7
        %s133 = scalar_select %p132, %s131, 7
        %s134 = smul.addr %s133, 4
        %s135 = scalar_lea.vmem %s0, %s134
        %s136 = smul.u32 4, %s9
      $region28: #{sage_classifier_forward.3} parent=23 // pred_fallthru
        _
    $region24: #{sage_classifier_forward.3} parent=5 // pred_fallthru
      _
    %p137 = scmp.le.s32.totalorder 1, %s9
    %p138 = scmp.lt.s32.totalorder %s9, 3
    %p139 = pnand %p137, %p138
    %p140 = pneg %p139
    // Predicated region
    $region29: #{sage_classifier_forward.3} parent=5 // pred_check
      _
    $region30: #{sage_classifier_forward.3} parent=5 // pred_check_branch
      %142 = sbr.rel (%p139) target = $region32
    $region31: #{sage_classifier_forward.3} parent=5 // pred_region
      %s143 = ssub.s32 %s9, 1
      %s144 = smul.u32 4, %s14
      %p145 = scmp.lt.s32.totalorder %s144, 7
      %s146 = scalar_select %p145, %s144, 7
      %s147 = smul.addr %s146, 4
      %s148 = scalar_lea.vmem %s0, %s147
      %p149 = pneg %p35
      %p150 = pneg %p32
      %p151 = pneg %p56
      %p152 = pneg %p53
      %p153 = pneg %p77
      %p154 = pneg %p74
      %p155 = pneg %p103
      %p156 = pneg %p100
      %s157 = smul.u32 4, %s14
      %p158 = scmp.lt.s32.totalorder %s157, 7
      %s159 = scalar_select %p158, %s157, 7
      %s160 = smul.addr %s159, 4
      %s161 = scalar_lea.vmem %s3, %s160
      %s162 = smul.u32 4, %s14
      %p163 = scmp.lt.s32.totalorder %s162, 7
      %s164 = scalar_select %p163, %s162, 7
      %s165 = smul.addr %s164, 4
      %s166 = scalar_lea.vmem %s0, %s165
      %s167 = smul.u32 4, %s14
      %s168 = smul.u32 4, %s14
      %p169 = scmp.lt.s32.totalorder %s168, 7
      %s170 = scalar_select %p169, %s168, 7
      %s171 = smul.addr %s170, 4
      %s172 = scalar_lea.vmem %s3, %s171
      %s173 = smul.u32 4, %s14
      %v175 = vld [vmem:[%s166] sm:$0xf]
      %v176 = vld [vmem:[%s166 + $0x4] sm:$0xf]
      %v177 = vld [vmem:[%s166 + $0x8] sm:$0xf]
      %v178 = vld [vmem:[%s166 + $0xc] sm:$0xf]
      %v179 = vld [vmem:[%s1] sm:$0xf]
      %v180 = vld [vmem:[%s1 + $0x4] sm:$0xf]
      %v181 = vld [vmem:[%s1 + $0x8] sm:$0xf]
      %v182 = vld [vmem:[%s1 + $0xc] sm:$0xf]
      %v183 = vld [vmem:[%s1 + $0x10] sm:$0xf]
      %v184 = vld [vmem:[%s1 + $0x14] sm:$0xf]
      %v185 = vld [vmem:[%s1 + $0x18] sm:$0xf]
      %v186 = vld [vmem:[%s1 + $0x1c] sm:$0xf]
      %v187 = vld [vmem:[%s2] sm:$0x1]
      %v189 = vlaneseq
      %v190 = vshrl.u32 %v189, 7
      %v191 = vsub.s32 0, %v190
      %v192 = vrot.slane %v187, %v191
      %v198 = vunpack.c.l.b16 %v175
      %v199 = vunpack.c.l.b16 %v176
      %v200 = vunpack.c.l.b16 %v177
      %v201 = vunpack.c.l.b16 %v178
      %v202 = vpack.c.b16 %v199, %v198
      %v203 = vpack.c.b16 %v201, %v200
      %v212 = vunpack.c.l.b16 %v179
      %v213 = vunpack.c.l.b16 %v180
      %v214 = vunpack.c.l.b16 %v181
      %v215 = vunpack.c.l.b16 %v182
      %v216 = vunpack.c.l.b16 %v183
      %v217 = vunpack.c.l.b16 %v184
      %v218 = vunpack.c.l.b16 %v185
      %v219 = vunpack.c.l.b16 %v186
      %v220 = vpack.c.b16 %v213, %v212
      %v221 = vpack.c.b16 %v215, %v214
      %v222 = vpack.c.b16 %v217, %v216
      %v223 = vpack.c.b16 %v219, %v218
      %vm228 = vcmask 523264
      %v230 = vsel %vm228, %v202, 0
      %v233 = vsel %vm228, %v203, 0
      %235 = vmatprep.subr.bf16.mxu0 0
      %236 = vmatpush1.bf16.msra.mxu0 0
      %237 = vmatprep.subr.bf16.mxu0 0
      %238 = vmatpush1.bf16.msra.mxu0 0
      %239 = vmatprep.subr.bf16.mxu0 0
      %240 = vmatpush1.bf16.msra.mxu0 0
      %241 = vmatprep.subr.bf16.mxu0 0
      %242 = vmatpush1.bf16.msra.mxu0 0
      %243 = vmatprep.subr.bf16.mxu0 0
      %244 = vmatpush1.bf16.msra.mxu0 %v223
      %245 = vmatprep.subr.bf16.mxu0 0
      %246 = vmatpush1.bf16.msra.mxu0 %v222
      %247 = vmatprep.subr.bf16.mxu0 0
      %248 = vmatpush1.bf16.msra.mxu0 %v221
      %249 = vmatprep.subr.bf16.mxu0 0
      %250 = vmatpush1.bf16.msra.mxu0 %v220
      %251 = vmatprep.subr.bf16.mxu0 0
      %252 = vmatpush2.bf16.msra.mxu0 0
      %253 = vmatprep.subr.bf16.mxu0 0
      %254 = vmatpush2.bf16.msra.mxu0 0
      %255 = vmatprep.subr.bf16.mxu0 0
      %256 = vmatpush2.bf16.msra.mxu0 0
      %257 = vmatprep.subr.bf16.mxu0 0
      %258 = vmatpush2.bf16.msra.mxu0 0
      %259 = vmatprep.subr.bf16.mxu0 0
      %260 = vmatpush2.bf16.msra.mxu0 0
      %261 = vmatprep.subr.bf16.mxu0 0
      %262 = vmatpush2.bf16.msra.mxu0 0
      %263 = vmatprep.subr.bf16.mxu0 0
      %264 = vmatpush2.bf16.msra.mxu0 0
      %265 = vmatprep.subr.bf16.mxu0 0
      %266 = vmatpush2.bf16.msra.mxu0 0
      %267 = vmatprep.mubr.bf16.mxu0 0
      %268 = vmatmul.mubr.bf16.gmra.mxu0 %v230
      %v269 = vpop.f32.mrf.mxu0
      %v270 = vadd.f32 %v192, %v269
      %v271 = vpop.f32.mrf.mxu0
      %v272 = vpop.f32.mrf.mxu0
      %v273 = vadd.f32 %v192, %v272
      %v274 = vpop.f32.mrf.mxu0
      %275 = vmatprep.mubr.bf16.mxu0 0
      %276 = vmatmul.mubr.bf16.gmra.mxu0 %v233
      %v277 = vpop.f32.mrf.mxu0
      %v278 = vadd.f32 %v192, %v277
      %v279 = vpop.f32.mrf.mxu0
      %v280 = vpop.f32.mrf.mxu0
      %v281 = vadd.f32 %v192, %v280
      %v282 = vpop.f32.mrf.mxu0
      %283 = vdwg.mxu0
      %v284 = vmax.f32 %v270, 0.0
      %v285 = vmax.f32 %v273, 0.0
      %v286 = vmax.f32 %v278, 0.0
      %v287 = vmax.f32 %v281, 0.0
      %v288 = vmul.f32 %v284, %v284
      %v289 = vmul.f32 %v285, %v285
      %v290 = vmul.f32 %v286, %v286
      %v291 = vmul.f32 %v287, %v287
      %vm292 = vcmask 261120
      %v293 = vsel %vm292, %v288, 0.0
      %294 = vadd.xlane.f32.xlu0 %v293
      %v295 = vpop.xlane.xlu0 %294
      %v296 = vsel %vm292, %v289, 0.0
      %297 = vadd.xlane.f32.xlu0 %v296
      %v298 = vpop.xlane.xlu0 %297
      %v299 = vsel %vm292, %v290, 0.0
      %300 = vadd.xlane.f32.xlu0 %v299
      %v301 = vpop.xlane.xlu0 %300
      %v302 = vsel %vm292, %v291, 0.0
      %303 = vadd.xlane.f32.xlu0 %v302
      %v304 = vpop.xlane.xlu0 %303
      %v305 = vadd.f32 %v295, 1e-12
      %v306 = vadd.f32 %v298, 1e-12
      %v307 = vadd.f32 %v301, 1e-12
      %v308 = vadd.f32 %v304, 1e-12
      %v309 = vrsqrt.pop %v305
      %v310 = vrsqrt.pop %v306
      %v311 = vrsqrt.pop %v307
      %v312 = vrsqrt.pop %v308
      %v313 = vmul.f32 %v284, %v309
      %v314 = vmul.f32 %v285, %v310
      %v315 = vmul.f32 %v286, %v311
      %v316 = vmul.f32 %v287, %v312
      %v317 = vpack.c.bf16 %v314, %v313
      %v318 = vpack.c.bf16 %v316, %v315
      %v321 = vunpack.c.l.b16 %v317
      %v322 = vunpack.c.h.b16 %v317
      %v323 = vunpack.c.l.b16 %v318
      %v324 = vunpack.c.h.b16 %v318
      %v325 = vpack.c.b16 %v321, %v321
      %v326 = vpack.c.b16 %v322, %v322
      %v327 = vpack.c.b16 %v323, %v323
      %v328 = vpack.c.b16 %v324, %v324
      %vm333 = vcmask 257024
      %334 = vst.msk [vmem:[%s172] sm:$0xf] %vm333, %v325
      %335 = vst.msk [vmem:[%s172 + $0x4] sm:$0xf] %vm333, %v326
      %336 = vst.msk [vmem:[%s172 + $0x8] sm:$0xf] %vm333, %v327
      %337 = vst.msk [vmem:[%s172 + $0xc] sm:$0xf] %vm333, %v328
      %s338 = smul.u32 4, %s14
      %p339 = scmp.lt.s32.totalorder %s338, 7
      %s340 = scalar_select %p339, %s338, 7
      %s341 = smul.addr %s340, 4
      %s342 = scalar_lea.vmem %s3, %s341
      // Predicated region
      $region33: #{sage_classifier_forward.3} parent=31 // pred_check
        %p343 = pneg %p100
      $region34: #{sage_classifier_forward.3} parent=31 // pred_check_branch
        %345 = sbr.rel (%p343) target = $region36
      $region35: #{sage_classifier_forward.3} parent=31 // pred_region
        %s346 = smul.u32 4, %s14
      $region36: #{sage_classifier_forward.3} parent=31 // pred_fallthru
        _
    $region32: #{sage_classifier_forward.3} parent=5 // pred_fallthru
      _
    %p347 = scmp.le.s32.totalorder 2, %s9
    // Predicated region
    $region37: #{sage_classifier_forward.3} parent=5 // pred_check
      %p348 = pneg %p347
    $region38: #{sage_classifier_forward.3} parent=5 // pred_check_branch
      %350 = sbr.rel (%p348) target = $region40
    $region39: #{sage_classifier_forward.3} parent=5 // pred_region
      %s351 = ssub.s32 %s9, 2
      // Predicated region
      $region41: #{sage_classifier_forward.3} parent=39 // pred_check
        %p352 = pneg %p106
      $region42: #{sage_classifier_forward.3} parent=39 // pred_check_branch
        %354 = sbr.rel (%p352) target = $region44
      $region43: #{sage_classifier_forward.3} parent=39 // pred_region
        %s355 = smul.u32 4, %s15
        %p356 = scmp.lt.s32.totalorder %s355, 7
        %s357 = scalar_select %p356, %s355, 7
        %s358 = smul.addr %s357, 4
        %s359 = scalar_lea.vmem %s3, %s358
      $region44: #{sage_classifier_forward.3} parent=39 // pred_fallthru
        _
    $region40: #{sage_classifier_forward.3} parent=5 // pred_fallthru
      _
  $region6: #{sage_classifier_forward.3} parent=0 // loop_footer
    %s13 = sadd.s32 1, %s9
  $region7: #{sage_classifier_forward.3} parent=0 // loop_footer_branch
    %8 = sbr.rel target = $region3
  $region8: #{sage_classifier_forward.3} parent=0 // loop_exit
    _

// kernel: sage_classifier_forward.4
$region0: #{sage_classifier_forward.4}
  #allocation0 [shape = 'u32[]', space=smem, size = 0x4, offset = 0x4, fixed_abs, tag = 'smem constant byte address 0x4 - core index']
  #allocation1 [shape = 'u32[144,128]{1,0:T(1,128)}', space=vmem, size = 0x12000, scoped, tag = 'internal scratch']
  %s0 = inlined_call_operand.vmem [shape: bf16[48,64], index: 0, kind: input, shape index: {}]
  %s1 = inlined_call_operand.vmem [shape: bf16[64,32], index: 1, kind: input, shape index: {}]
  %s2 = inlined_call_operand.vmem [shape: f32[1,32], index: 2, kind: input, shape index: {}]
  %s3 = inlined_call_operand.vmem [shape: bf16[48,32], index: 3, kind: output, shape index: {}]
  %s4 = sld [smem:[#allocation0]]
  $region45: #{sage_classifier_forward.4} parent=0
    _
  %s6 = ssub.s32 1, %s4
  %s7 = scalar_select 0, %s6, %s4
  loop: start=0, step=1, limit=4
  $region2: #{sage_classifier_forward.4} parent=0 // loop_pre_header
    _
  $region3: #{sage_classifier_forward.4} parent=0 // loop_header
    %s9 = sphi 0, %s13
    %p10 = scmp.ge.s32.totalorder %s9, 4
    %s19 = sphi 0, %s21
    %s22 = sphi 0, %s19
    %s23 = sphi 0, %s22
    %s39 = sphi 0, %s23
    %s43 = sphi 0, %s43
    %s45 = sphi 0, %s43
    %s46 = sphi 0, %s45
    %s60 = sphi 0, %s46
    %s64 = sphi 0, %s64
    %s66 = sphi 0, %s64
    %s67 = sphi 0, %s66
    %s81 = sphi 0, %s67
    %s87 = sphi 0, %s89
    %s90 = sphi 0, %s87
    %s91 = sphi 0, %s90
    %s107 = sphi 0, %s91
  $region4: #{sage_classifier_forward.4} parent=0 // loop_header_branch
    %12 = sbr.rel (%p10) target = $region8
  $region5: #{sage_classifier_forward.4} parent=0 // loop_body
    %s14 = ssub.s32 %s9, 1
    %s15 = ssub.s32 %s9, 2
    %s16 = sadd.s32 %s9, 1
    %s17 = ssub.s32 %s9, %s16
    %p18 = scmp.eq.s32.totalorder %s17, 0
    %s20 = sadd.s32 %s19, 1
    %s21 = scalar_select %p18, %s19, %s20
    %p24 = pneg %p18
    %p25 = scmp.eq.s32.totalorder %s9, 1
    %p26 = por %p24, %p25
    %p27 = scmp.ne.s32.totalorder %s19, %s22
    %p28 = scmp.eq.s32.totalorder %s9, 0
    %p29 = por %p27, %p28
    %p30 = scmp.ne.s32.totalorder %s19, %s22
    %p31 = scmp.eq.s32.totalorder %s14, 1
    %p32 = por %p30, %p31
    %p33 = scmp.ne.s32.totalorder %s22, %s23
    %p34 = scmp.eq.s32.totalorder %s14, 0
    %p35 = por %p33, %p34
    %p36 = scmp.ne.s32.totalorder %s22, %s23
    %p37 = scmp.eq.s32.totalorder %s15, 1
    %p38 = por %p36, %p37
    %p40 = scmp.ne.s32.totalorder %s23, %s39
    %p41 = scmp.eq.s32.totalorder %s15, 0
    %p42 = por %p40, %p41
    %s44 = sadd.s32 %s43, 1
    %p47 = scmp.eq.s32.totalorder %s9, 1
    %p48 = scmp.ne.s32.totalorder %s43, %s45
    %p49 = scmp.eq.s32.totalorder %s9, 0
    %p50 = por %p48, %p49
    %p51 = scmp.ne.s32.totalorder %s43, %s45
    %p52 = scmp.eq.s32.totalorder %s14, 1
    %p53 = por %p51, %p52
    %p54 = scmp.ne.s32.totalorder %s45, %s46
    %p55 = scmp.eq.s32.totalorder %s14, 0
    %p56 = por %p54, %p55
    %p57 = scmp.ne.s32.totalorder %s45, %s46
    %p58 = scmp.eq.s32.totalorder %s15, 1
    %p59 = por %p57, %p58
    %p61 = scmp.ne.s32.totalorder %s46, %s60
    %p62 = scmp.eq.s32.totalorder %s15, 0
    %p63 = por %p61, %p62
    %s65 = sadd.s32 %s64, 1
    %p68 = scmp.eq.s32.totalorder %s9, 1
    %p69 = scmp.ne.s32.totalorder %s64, %s66
    %p70 = scmp.eq.s32.totalorder %s9, 0
    %p71 = por %p69, %p70
    %p72 = scmp.ne.s32.totalorder %s64, %s66
    %p73 = scmp.eq.s32.totalorder %s14, 1
    %p74 = por %p72, %p73
    %p75 = scmp.ne.s32.totalorder %s66, %s67
    %p76 = scmp.eq.s32.totalorder %s14, 0
    %p77 = por %p75, %p76
    %p78 = scmp.ne.s32.totalorder %s66, %s67
    %p79 = scmp.eq.s32.totalorder %s15, 1
    %p80 = por %p78, %p79
    %p82 = scmp.ne.s32.totalorder %s67, %s81
    %p83 = scmp.eq.s32.totalorder %s15, 0
    %p84 = por %p82, %p83
    %s85 = ssub.s32 %s9, %s16
    %p86 = scmp.eq.s32.totalorder %s85, 0
    %s88 = sadd.s32 %s87, 1
    %s89 = scalar_select %p86, %s87, %s88
    %p92 = pneg %p86
    %p93 = scmp.eq.s32.totalorder %s9, 1
    %p94 = por %p92, %p93
    %p95 = scmp.ne.s32.totalorder %s87, %s90
    %p96 = scmp.eq.s32.totalorder %s9, 0
    %p97 = por %p95, %p96
    %p98 = scmp.ne.s32.totalorder %s87, %s90
    %p99 = scmp.eq.s32.totalorder %s14, 1
    %p100 = por %p98, %p99
    %p101 = scmp.ne.s32.totalorder %s90, %s91
    %p102 = scmp.eq.s32.totalorder %s14, 0
    %p103 = por %p101, %p102
    %p104 = scmp.ne.s32.totalorder %s90, %s91
    %p105 = scmp.eq.s32.totalorder %s15, 1
    %p106 = por %p104, %p105
    %p108 = scmp.ne.s32.totalorder %s91, %s107
    %p109 = scmp.eq.s32.totalorder %s15, 0
    %p110 = por %p108, %p109
    %p111 = scmp.le.s32.totalorder 1, %s9
    %p112 = scmp.lt.s32.totalorder %s9, 3
    %p113 = pnand %p111, %p112
    %p114 = pneg %p113
    // Predicated region
    $region9: #{sage_classifier_forward.4} parent=5 // pred_check
      _
    $region10: #{sage_classifier_forward.4} parent=5 // pred_check_branch
      %116 = sbr.rel (%p113) target = $region12
    $region11: #{sage_classifier_forward.4} parent=5 // pred_region
      %s117 = ssub.s32 %s9, 1
      // Predicated region
      $region13: #{sage_classifier_forward.4} parent=11 // pred_check
        %p118 = pneg %p56
      $region14: #{sage_classifier_forward.4} parent=11 // pred_check_branch
        %120 = sbr.rel (%p118) target = $region16
      $region15: #{sage_classifier_forward.4} parent=11 // pred_region
        _
      $region16: #{sage_classifier_forward.4} parent=11 // pred_fallthru
        _
      // Predicated region
      $region17: #{sage_classifier_forward.4} parent=11 // pred_check
        %p121 = pneg %p77
      $region18: #{sage_classifier_forward.4} parent=11 // pred_check_branch
        %123 = sbr.rel (%p121) target = $region20
      $region19: #{sage_classifier_forward.4} parent=11 // pred_region
        _
      $region20: #{sage_classifier_forward.4} parent=11 // pred_fallthru
        _
    $region12: #{sage_classifier_forward.4} parent=5 // pred_fallthru
      _
    %p124 = scmp.lt.s32.totalorder %s9, 2
    // Predicated region
    $region21: #{sage_classifier_forward.4} parent=5 // pred_check
      %p125 = pneg %p124
    $region22: #{sage_classifier_forward.4} parent=5 // pred_check_branch
      %127 = sbr.rel (%p125) target = $region24
    $region23: #{sage_classifier_forward.4} parent=5 // pred_region
      // Predicated region
      $region25: #{sage_classifier_forward.4} parent=23 // pred_check
        %p128 = pneg %p29
      $region26: #{sage_classifier_forward.4} parent=23 // pred_check_branch
        %130 = sbr.rel (%p128) target = $region28
      $region27: #{sage_classifier_forward.4} parent=23 // pred_region
        %s131 = smul.u32 3, %s9
        %p132 = scmp.lt.s32.totalorder %s131, 5
        %s133 = scalar_select %p132, %s131, 5
        %s134 = smul.addr %s133, 4
        %s135 = scalar_lea.vmem %s0, %s134
        %s136 = smul.u32 3, %s9
      $region28: #{sage_classifier_forward.4} parent=23 // pred_fallthru
        _
    $region24: #{sage_classifier_forward.4} parent=5 // pred_fallthru
      _
    %p137 = scmp.le.s32.totalorder 1, %s9
    %p138 = scmp.lt.s32.totalorder %s9, 3
    %p139 = pnand %p137, %p138
    %p140 = pneg %p139
    // Predicated region
    $region29: #{sage_classifier_forward.4} parent=5 // pred_check
      _
    $region30: #{sage_classifier_forward.4} parent=5 // pred_check_branch
      %142 = sbr.rel (%p139) target = $region32
    $region31: #{sage_classifier_forward.4} parent=5 // pred_region
      %s143 = ssub.s32 %s9, 1
      %s144 = smul.u32 3, %s14
      %p145 = scmp.lt.s32.totalorder %s144, 5
      %s146 = scalar_select %p145, %s144, 5
      %s147 = smul.addr %s146, 4
      %s148 = scalar_lea.vmem %s0, %s147
      %p149 = pneg %p35
      %p150 = pneg %p32
      %p151 = pneg %p56
      %p152 = pneg %p53
      %p153 = pneg %p77
      %p154 = pneg %p74
      %p155 = pneg %p103
      %p156 = pneg %p100
      %s157 = smul.u32 3, %s14
      %p158 = scmp.lt.s32.totalorder %s157, 5
      %s159 = scalar_select %p158, %s157, 5
      %s160 = smul.addr %s159, 4
      %s161 = scalar_lea.vmem %s3, %s160
      %s162 = smul.u32 3, %s14
      %p163 = scmp.lt.s32.totalorder %s162, 5
      %s164 = scalar_select %p163, %s162, 5
      %s165 = smul.addr %s164, 4
      %s166 = scalar_lea.vmem %s0, %s165
      %s167 = smul.u32 3, %s14
      %s168 = smul.u32 3, %s14
      %p169 = scmp.lt.s32.totalorder %s168, 5
      %s170 = scalar_select %p169, %s168, 5
      %s171 = smul.addr %s170, 4
      %s172 = scalar_lea.vmem %s3, %s171
      %s173 = smul.u32 3, %s14
      %v175 = vld [vmem:[%s166] sm:$0xf]
      %v176 = vld [vmem:[%s166 + $0x4] sm:$0xf]
      %v177 = vld [vmem:[%s166 + $0x8] sm:$0xf]
      %v178 = vld [vmem:[%s1] sm:$0xf]
      %v179 = vld [vmem:[%s1 + $0x4] sm:$0xf]
      %v180 = vld [vmem:[%s1 + $0x8] sm:$0xf]
      %v181 = vld [vmem:[%s1 + $0xc] sm:$0xf]
      %v182 = vld [vmem:[%s1 + $0x10] sm:$0xf]
      %v183 = vld [vmem:[%s1 + $0x14] sm:$0xf]
      %v184 = vld [vmem:[%s1 + $0x18] sm:$0xf]
      %v185 = vld [vmem:[%s1 + $0x1c] sm:$0xf]
      %v186 = vld [vmem:[%s2] sm:$0x1]
      %v188 = vlaneseq
      %v189 = vshrl.u32 %v188, 7
      %v190 = vsub.s32 0, %v189
      %v191 = vrot.slane %v186, %v190
      %v196 = vunpack.c.l.b16 %v175
      %v197 = vunpack.c.l.b16 %v176
      %v198 = vunpack.c.l.b16 %v177
      %v199 = vpack.c.b16 %v197, %v196
      %v200 = vpack.c.b16 %v198, %v198
      %v209 = vunpack.c.l.b16 %v178
      %v210 = vunpack.c.l.b16 %v179
      %v211 = vunpack.c.l.b16 %v180
      %v212 = vunpack.c.l.b16 %v181
      %v213 = vunpack.c.l.b16 %v182
      %v214 = vunpack.c.l.b16 %v183
      %v215 = vunpack.c.l.b16 %v184
      %v216 = vunpack.c.l.b16 %v185
      %v217 = vpack.c.b16 %v210, %v209
      %v218 = vpack.c.b16 %v212, %v211
      %v219 = vpack.c.b16 %v214, %v213
      %v220 = vpack.c.b16 %v216, %v215
      %vm225 = vcmask 523264
      %v227 = vsel %vm225, %v199, 0
      %v230 = vsel %vm225, %v200, 0
      %232 = vmatprep.subr.bf16.mxu0 0
      %233 = vmatpush1.bf16.msra.mxu0 0
      %234 = vmatprep.subr.bf16.mxu0 0
      %235 = vmatpush1.bf16.msra.mxu0 0
      %236 = vmatprep.subr.bf16.mxu0 0
      %237 = vmatpush1.bf16.msra.mxu0 0
      %238 = vmatprep.subr.bf16.mxu0 0
      %239 = vmatpush1.bf16.msra.mxu0 0
      %240 = vmatprep.subr.bf16.mxu0 0
      %241 = vmatpush1.bf16.msra.mxu0 %v220
      %242 = vmatprep.subr.bf16.mxu0 0
      %243 = vmatpush1.bf16.msra.mxu0 %v219
      %244 = vmatprep.subr.bf16.mxu0 0
      %245 = vmatpush1.bf16.msra.mxu0 %v218
      %246 = vmatprep.subr.bf16.mxu0 0
      %247 = vmatpush1.bf16.msra.mxu0 %v217
      %248 = vmatprep.subr.bf16.mxu0 0
      %249 = vmatpush2.bf16.msra.mxu0 0
      %250 = vmatprep.subr.bf16.mxu0 0
      %251 = vmatpush2.bf16.msra.mxu0 0
      %252 = vmatprep.subr.bf16.mxu0 0
      %253 = vmatpush2.bf16.msra.mxu0 0
      %254 = vmatprep.subr.bf16.mxu0 0
      %255 = vmatpush2.bf16.msra.mxu0 0
      %256 = vmatprep.subr.bf16.mxu0 0
      %257 = vmatpush2.bf16.msra.mxu0 0
      %258 = vmatprep.subr.bf16.mxu0 0
      %259 = vmatpush2.bf16.msra.mxu0 0
      %260 = vmatprep.subr.bf16.mxu0 0
      %261 = vmatpush2.bf16.msra.mxu0 0
      %262 = vmatprep.subr.bf16.mxu0 0
      %263 = vmatpush2.bf16.msra.mxu0 0
      %264 = vmatprep.mubr.bf16.mxu0 0
      %265 = vmatmul.mubr.bf16.gmra.mxu0 %v227
      %v266 = vpop.f32.mrf.mxu0
      %v267 = vadd.f32 %v191, %v266
      %v268 = vpop.f32.mrf.mxu0
      %v269 = vpop.f32.mrf.mxu0
      %v270 = vadd.f32 %v191, %v269
      %v271 = vpop.f32.mrf.mxu0
      %272 = vmatprep.mubr.bf16.mxu0 0
      %273 = vmatmul.mubr.bf16.gmra.mxu0 %v230
      %v274 = vpop.f32.mrf.mxu0
      %v275 = vadd.f32 %v191, %v274
      %v276 = vpop.f32.mrf.mxu0
      %v277 = vpop.f32.mrf.mxu0
      %v278 = vpop.f32.mrf.mxu0
      %279 = vdwg.mxu0
      %v280 = vmax.f32 %v267, 0.0
      %v281 = vmax.f32 %v270, 0.0
      %v282 = vmax.f32 %v275, 0.0
      %v283 = vmul.f32 %v280, %v280
      %v284 = vmul.f32 %v281, %v281
      %v285 = vmul.f32 %v282, %v282
      %vm286 = vcmask 261120
      %v287 = vsel %vm286, %v283, 0.0
      %288 = vadd.xlane.f32.xlu0 %v287
      %v289 = vpop.xlane.xlu0 %288
      %v290 = vsel %vm286, %v284, 0.0
      %291 = vadd.xlane.f32.xlu0 %v290
      %v292 = vpop.xlane.xlu0 %291
      %v293 = vsel %vm286, %v285, 0.0
      %294 = vadd.xlane.f32.xlu0 %v293
      %v295 = vpop.xlane.xlu0 %294
      %v296 = vadd.f32 %v289, 1e-12
      %v297 = vadd.f32 %v292, 1e-12
      %v298 = vadd.f32 %v295, 1e-12
      %v299 = vrsqrt.pop %v296
      %v300 = vrsqrt.pop %v297
      %v301 = vrsqrt.pop %v298
      %v302 = vmul.f32 %v280, %v299
      %v303 = vmul.f32 %v281, %v300
      %v304 = vmul.f32 %v282, %v301
      %v305 = vpack.c.bf16 %v303, %v302
      %v306 = vpack.c.bf16 %v304, %v304
      %v309 = vunpack.c.l.b16 %v305
      %v310 = vunpack.c.h.b16 %v305
      %v311 = vunpack.c.l.b16 %v306
      %v312 = vpack.c.b16 %v309, %v309
      %v313 = vpack.c.b16 %v310, %v310
      %v314 = vpack.c.b16 %v311, %v311
      %vm318 = vcmask 257024
      %319 = vst.msk [vmem:[%s172] sm:$0xf] %vm318, %v312
      %320 = vst.msk [vmem:[%s172 + $0x4] sm:$0xf] %vm318, %v313
      %321 = vst.msk [vmem:[%s172 + $0x8] sm:$0xf] %vm318, %v314
      %s322 = smul.u32 3, %s14
      %p323 = scmp.lt.s32.totalorder %s322, 5
      %s324 = scalar_select %p323, %s322, 5
      %s325 = smul.addr %s324, 4
      %s326 = scalar_lea.vmem %s3, %s325
      // Predicated region
      $region33: #{sage_classifier_forward.4} parent=31 // pred_check
        %p327 = pneg %p100
      $region34: #{sage_classifier_forward.4} parent=31 // pred_check_branch
        %329 = sbr.rel (%p327) target = $region36
      $region35: #{sage_classifier_forward.4} parent=31 // pred_region
        %s330 = smul.u32 3, %s14
      $region36: #{sage_classifier_forward.4} parent=31 // pred_fallthru
        _
    $region32: #{sage_classifier_forward.4} parent=5 // pred_fallthru
      _
    %p331 = scmp.le.s32.totalorder 2, %s9
    // Predicated region
    $region37: #{sage_classifier_forward.4} parent=5 // pred_check
      %p332 = pneg %p331
    $region38: #{sage_classifier_forward.4} parent=5 // pred_check_branch
      %334 = sbr.rel (%p332) target = $region40
    $region39: #{sage_classifier_forward.4} parent=5 // pred_region
      %s335 = ssub.s32 %s9, 2
      // Predicated region
      $region41: #{sage_classifier_forward.4} parent=39 // pred_check
        %p336 = pneg %p106
      $region42: #{sage_classifier_forward.4} parent=39 // pred_check_branch
        %338 = sbr.rel (%p336) target = $region44
      $region43: #{sage_classifier_forward.4} parent=39 // pred_region
        %s339 = smul.u32 3, %s15
        %p340 = scmp.lt.s32.totalorder %s339, 5
        %s341 = scalar_select %p340, %s339, 5
        %s342 = smul.addr %s341, 4
        %s343 = scalar_lea.vmem %s3, %s342
      $region44: #{sage_classifier_forward.4} parent=39 // pred_fallthru
        _
    $region40: #{sage_classifier_forward.4} parent=5 // pred_fallthru
      _
  $region6: #{sage_classifier_forward.4} parent=0 // loop_footer
    %s13 = sadd.s32 1, %s9
  $region7: #{sage_classifier_forward.4} parent=0 // loop_footer_branch
    %8 = sbr.rel target = $region3
  $region8: #{sage_classifier_forward.4} parent=0 // loop_exit
    _

// kernel: sage_classifier_forward.5
$region0: #{sage_classifier_forward.5}
  #allocation0 [shape = 'u32[]', space=smem, size = 0x4, offset = 0x4, fixed_abs, tag = 'smem constant byte address 0x4 - core index']
  #allocation1 [shape = 'u32[144,128]{1,0:T(1,128)}', space=vmem, size = 0x12000, scoped, tag = 'internal scratch']
  %s0 = inlined_call_operand.vmem [shape: bf16[8,64], index: 0, kind: input, shape index: {}]
  %s1 = inlined_call_operand.vmem [shape: bf16[64,128], index: 1, kind: input, shape index: {}]
  %s2 = inlined_call_operand.vmem [shape: f32[1,128], index: 2, kind: input, shape index: {}]
  %s3 = inlined_call_operand.vmem [shape: s32[8,1], index: 3, kind: input, shape index: {}]
  %s4 = inlined_call_operand.hbm [shape: f32[1,1], index: 4, kind: output, shape index: {}]
  %s5 = sld [smem:[#allocation0]]
  $region30: #{sage_classifier_forward.5} parent=0
    _
  %s7 = ssub.s32 1, %s5
  %s8 = scalar_select 0, %s7, %s5
  $region1: #{sage_classifier_forward.5} parent=0
    #allocation2 [shape = 'u8[512]{0}', space=vmem, size = 0x400, scoped, tag = 'output window, operand 0, single buffered']
    #allocation3 [shape = 's32[1]{0}', space=sflag, size = 0x4, scoped, tag = 'scoped memory for sage_classifier_forward.5']
    %9 = vsyncpa [#allocation3], 0
    // Predicated region
    $region2: #{sage_classifier_forward.5} parent=1 // pred_check
      _
    $region3: #{sage_classifier_forward.5} parent=1 // pred_check_branch
      %11 = sbr.rel (0) target = $region5
    $region4: #{sage_classifier_forward.5} parent=1 // pred_region
      _
    $region5: #{sage_classifier_forward.5} parent=1 // pred_fallthru
      _
    // Predicated region
    $region6: #{sage_classifier_forward.5} parent=1 // pred_check
      _
    $region7: #{sage_classifier_forward.5} parent=1 // pred_check_branch
      %13 = sbr.rel (0) target = $region9
    $region8: #{sage_classifier_forward.5} parent=1 // pred_region
      _
    $region9: #{sage_classifier_forward.5} parent=1 // pred_fallthru
      _
    // Predicated region
    $region10: #{sage_classifier_forward.5} parent=1 // pred_check
      _
    $region11: #{sage_classifier_forward.5} parent=1 // pred_check_branch
      %15 = sbr.rel (0) target = $region13
    $region12: #{sage_classifier_forward.5} parent=1 // pred_region
      _
    $region13: #{sage_classifier_forward.5} parent=1 // pred_fallthru
      _
    // Predicated region
    $region14: #{sage_classifier_forward.5} parent=1 // pred_check
      _
    $region15: #{sage_classifier_forward.5} parent=1 // pred_check_branch
      %17 = sbr.rel (0) target = $region17
    $region16: #{sage_classifier_forward.5} parent=1 // pred_region
      _
    $region17: #{sage_classifier_forward.5} parent=1 // pred_fallthru
      _
    %p19 = scmp.eq.s32.totalorder 0, 0
    // Predicated region
    $region18: #{sage_classifier_forward.5} parent=1 // pred_check
      %p20 = pneg %p19
    $region19: #{sage_classifier_forward.5} parent=1 // pred_check_branch
      %22 = sbr.rel (%p20) target = $region21
    $region20: #{sage_classifier_forward.5} parent=1 // pred_region
      %vm23 = vcmask 0
      %24 = vst.msk [vmem:[#allocation2] sm:$0x1] %vm23, 0.0
    $region21: #{sage_classifier_forward.5} parent=1 // pred_fallthru
      _
    %v25 = vld [vmem:[%s0] sm:$0xf]
    %v26 = vld [vmem:[%s1] sm:$0xf]
    %v27 = vld [vmem:[%s1 + $0x4] sm:$0xf]
    %v28 = vld [vmem:[%s1 + $0x8] sm:$0xf]
    %v29 = vld [vmem:[%s1 + $0xc] sm:$0xf]
    %v30 = vld [vmem:[%s1 + $0x10] sm:$0xf]
    %v31 = vld [vmem:[%s1 + $0x14] sm:$0xf]
    %v32 = vld [vmem:[%s1 + $0x18] sm:$0xf]
    %v33 = vld [vmem:[%s1 + $0x1c] sm:$0xf]
    %v34 = vld [vmem:[%s2] sm:$0x1]
    %v36 = vlaneseq
    %v37 = vshrl.u32 %v36, 7
    %v38 = vsub.s32 0, %v37
    %v39 = vrot.slane %v34, %v38
    %v49 = vunpack.c.l.b16 %v26
    %v50 = vunpack.c.l.b16 %v27
    %v51 = vunpack.c.l.b16 %v28
    %v52 = vunpack.c.l.b16 %v29
    %v53 = vunpack.c.l.b16 %v30
    %v54 = vunpack.c.l.b16 %v31
    %v55 = vunpack.c.l.b16 %v32
    %v56 = vunpack.c.l.b16 %v33
    %v57 = vpack.c.b16 %v50, %v49
    %v58 = vpack.c.b16 %v52, %v51
    %v59 = vpack.c.b16 %v54, %v53
    %v60 = vpack.c.b16 %v56, %v55
    %vm65 = vcmask 523264
    %v67 = vsel %vm65, %v25, 0
    %69 = vmatprep.subr.bf16.mxu0 0
    %70 = vmatpush1.bf16.msra.mxu0 0
    %71 = vmatprep.subr.bf16.mxu0 0
    %72 = vmatpush1.bf16.msra.mxu0 0
    %73 = vmatprep.subr.bf16.mxu0 0
    %74 = vmatpush1.bf16.msra.mxu0 0
    %75 = vmatprep.subr.bf16.mxu0 0
    %76 = vmatpush1.bf16.msra.mxu0 0
    %77 = vmatprep.subr.bf16.mxu0 0
    %78 = vmatpush1.bf16.msra.mxu0 %v60
    %79 = vmatprep.subr.bf16.mxu0 0
    %80 = vmatpush1.bf16.msra.mxu0 %v59
    %81 = vmatprep.subr.bf16.mxu0 0
    %82 = vmatpush1.bf16.msra.mxu0 %v58
    %83 = vmatprep.subr.bf16.mxu0 0
    %84 = vmatpush1.bf16.msra.mxu0 %v57
    %85 = vmatprep.subr.bf16.mxu0 0
    %86 = vmatpush2.bf16.msra.mxu0 0
    %87 = vmatprep.subr.bf16.mxu0 0
    %88 = vmatpush2.bf16.msra.mxu0 0
    %89 = vmatprep.subr.bf16.mxu0 0
    %90 = vmatpush2.bf16.msra.mxu0 0
    %91 = vmatprep.subr.bf16.mxu0 0
    %92 = vmatpush2.bf16.msra.mxu0 0
    %93 = vmatprep.subr.bf16.mxu0 0
    %94 = vmatpush2.bf16.msra.mxu0 0
    %95 = vmatprep.subr.bf16.mxu0 0
    %96 = vmatpush2.bf16.msra.mxu0 0
    %97 = vmatprep.subr.bf16.mxu0 0
    %98 = vmatpush2.bf16.msra.mxu0 0
    %99 = vmatprep.subr.bf16.mxu0 0
    %100 = vmatpush2.bf16.msra.mxu0 0
    %101 = vmatprep.mubr.bf16.mxu0 0
    %102 = vmatmul.mubr.bf16.gmra.mxu0 %v67
    %v103 = vpop.f32.mrf.mxu0
    %v104 = vadd.f32 %v39, %v103
    %v105 = vpop.f32.mrf.mxu0
    %v106 = vpop.f32.mrf.mxu0
    %v107 = vpop.f32.mrf.mxu0
    %108 = vdwg.mxu0
    %v109 = vmul.f32 %v104, %v104
    %110 = vadd.xlane.f32.xlu0 %v109
    %v111 = vpop.xlane.xlu0 %110
    %v112 = vadd.f32 %v111, 1e-12
    %v113 = vrsqrt.pop %v112
    %v114 = vmul.f32 %v104, %v113
    %v115 = vlaneseq
    %v116 = vand.u32 %v115, 127
    %vm117 = vcmp.lt.s32.totalorder %v116, 22
    %v118 = vld [vmem:[%s3] sm:$0xff]
    %v119 = vsel %vm117, %v114, -1e+30
    %120 = vmax.xlane.f32.xlu0 %v119
    %v121 = vpop.xlane.xlu0 %120
    %v122 = vsub.f32 %v114, %v121
    %v123 = vmul.f32 %v122, 1.442695
    %v124 = vpow.pop %v123
    %v125 = vsel %vm117, %v124, 0.0
    %126 = vadd.xlane.f32.xlu0 %v125
    %v127 = vpop.xlane.xlu0 %126
    %v128 = vlog2.pop %v127
    %v129 = vmul.f32 %v128, 0.6931472
    %v130 = vadd.f32 %v129, %v121
    %131 = vset.pattern.permute.xlu0 0
    %132 = vperm.xlu0 %131, %v118
    %v133 = vpop.permute.xlu0 %132
    %vm134 = vcmp.eq.s32.totalorder %v116, %v133
    %v135 = vsel %vm134, %v114, 0.0
    %136 = vadd.xlane.f32.xlu0 %v135
    %v137 = vpop.xlane.xlu0 %136
    %vm138 = vcmp.ge.s32.totalorder %v118, 0
    %v139 = vsel %vm138, 1, 0
    %v140 = vcvt.s32.f32 %v139
    %v141 = vsub.f32 %v130, %v137
    %v142 = vmul.f32 %v141, %v140
    %v143 = vld [vmem:[#allocation2] sm:$0x1]
    %vm144 = vcmask 7168
    %v145 = vsel %vm144, %v142, 0.0
    %v146 = vrot.slane %v145, 4
    %v147 = vadd.f32 %v145, %v146
    %v148 = vrot.slane %v147, 2
    %v149 = vadd.f32 %v147, %v148
    %v150 = vrot.slane %v149, 1
    %v151 = vadd.f32 %v149, %v150
    %v152 = vmul.f32 %v151, 0.125
    %v153 = vadd.f32 %v143, %v152
    %vm154 = vcmask 0
    %155 = vst.msk [vmem:[#allocation2] sm:$0x1] %vm154, %v153
    // Predicated region
    $region22: #{sage_classifier_forward.5} parent=1 // pred_check
      _
    $region23: #{sage_classifier_forward.5} parent=1 // pred_check_branch
      %157 = sbr.rel (0) target = $region25
    $region24: #{sage_classifier_forward.5} parent=1 // pred_region
      %s159 = ssub.s32 16, 16
      %160 = vsyncadd [#allocation3], %s159
      %s162 = sshll.u32 [#allocation2], 4
      %s163 = int_to_ptr.vmem [resolvable:$true] %s162
      %165 = dma.vmem_to_hbm [thread:$0]  %s163, 16, %s4, [#allocation3]
    $region25: #{sage_classifier_forward.5} parent=1 // pred_fallthru
      _
    // Predicated region
    $region26: #{sage_classifier_forward.5} parent=1 // pred_check
      _
    $region27: #{sage_classifier_forward.5} parent=1 // pred_check_branch
      %167 = sbr.rel (0) target = $region29
    $region28: #{sage_classifier_forward.5} parent=1 // pred_region
      %168 = dma.done [#allocation3], 16
    $region29: #{sage_classifier_forward.5} parent=1 // pred_fallthru
      _
    %169 = vsyncpa [#allocation3], 1

</llo_original>
